<compile_context>
chip_gen: v7x
topology: tpu7x:2x2x1
jax: 0.10.0
libtpu: 0.0.40
codegen_flags: <defaults>
</compile_context>

<pallas_src>
import jax
import jax.numpy as jnp
from jax import lax
from jax.experimental import pallas as pl
from jax.experimental.pallas import tpu as pltpu

BN_EPS = 1e-5                 # PyTorch BatchNorm2d default
POOL_KS = (5, 9, 13)          # SPP default max-pool kernel sizes (static!)
MXU_DTYPE = jnp.bfloat16      # matmul operand dtype (f32 accumulation)
POOL_DTYPE = jnp.float32      # pooling dtype (see TODO: bf16 on v6e/v7x)
# Stands in for MaxPool2d's -inf padding.  Safe because pooling runs on
# post-SiLU values (>= -0.2785), so the padding can never win the max.
_NEG = -1e30


# ------------------------------ in-kernel helpers ---------------------------

def _silu(y):
    # SiLU via tanh: sigmoid(y) = 0.5*tanh(0.5*y) + 0.5 -> a single EUP
    # transcendental per element (vs exp + reciprocal) and no approx-recip error.
    return y * (0.5 * jnp.tanh(0.5 * y) + 0.5)


# --------------------------------- kernel -----------------------------------

def _make_spp_kernel(h, w, pool_ks):
    # Cascade identity for stride-1 odd-window max pools:
    #   pool_{k2}(x) = pool_{k2-k1+1}(pool_{k1}(x)),
    # so (5, 9, 13) becomes three cascaded 5x5 pools (exactly SPPF).
    deltas = []
    prev = 1
    for k in pool_ks:
        assert k % 2 == 1 and k > prev, "SPP pool sizes must be odd and increasing"
        deltas.append(k - prev + 1)
        prev = k
    max_rad = max(d // 2 for d in deltas)
    P = h * w

    def kernel(col_ref, x_ref, w1_ref, b1_ref, w2_ref, b2_ref, o_ref):
        # col_ref: (1, P)        int32  column index of each flat pixel (p % w)
        # x_ref  : (B, c1, P)    f32    channels-major batch block
        # w1_ref : (c_, c1)      bf16   BN scale folded in
        # b1_ref : (c_, 1)       f32
        # w2_ref : (L, c2, c_)   bf16   BN scale folded in, one slice per level
        # b2_ref : (c2, 1)       f32
        # o_ref  : (B, c2, P)    f32
        B = x_ref.shape[0]

        # Boundary masks for the roll-based shifts (hoisted: shared by every
        # cascade stage and batch element).  Flat pixel index p = row*w + col.
        col = col_ref[...]                                    # (1, P)
        flat = lax.broadcasted_iota(jnp.int32, (1, P), 1)     # (1, P)
        w_taps, h_taps = [], []
        for s in range(1, max_rad + 1):
            #         (flat shift, fwd-neighbour valid,  bwd-neighbour valid)
            w_taps.append((s,       col < (w - s),        col >= s))
            h_taps.append((s * w,   flat < (h - s) * w,   flat >= s * w))

        neg = jnp.asarray(_NEG, POOL_DTYPE)

        def shift_max(v, taps, rad):
            # max over +/-1..rad neighbours along one spatial axis.
            # Each tap: one XLU lane-rotate + one VPU select + maxes; no -inf
            # slabs and no concatenated copies of the tile.
            out = v
            for flat_s, m_fwd, m_bwd in taps[:rad]:
                fwd = jnp.where(m_fwd, pltpu.roll(v, P - flat_s, axis=1), neg)
                bwd = jnp.where(m_bwd, pltpu.roll(v, flat_s, axis=1), neg)
                out = jnp.maximum(out, jnp.maximum(fwd, bwd))
            return out

        def pool2d(v, rad):
            # Separable stride-1 (2*rad+1)x(2*rad+1) 'same' max pool on (C, P).
            return shift_max(shift_max(v, w_taps, rad), h_taps, rad)

        for b in range(B):                                    # static unroll
            xb = x_ref[b].astype(w1_ref.dtype)                # (c1, P) bf16

            # ---- cv1: 1x1 conv (+folded BN) + SiLU; N = P (lane-dense MXU) --
            y = jnp.dot(w1_ref[...], xb, preferred_element_type=jnp.float32)
            y = _silu(y + b1_ref[...])                        # (c_, P) f32
            y = y.astype(POOL_DTYPE)

            # ---- cv2 over the virtual concat, interleaved with the cascade --
            # Each level is contracted against its slice of the folded cv2
            # weights as soon as it exists; the first dot initialises the
            # accumulator and the concat is never built.
            z = jnp.dot(w2_ref[0], y.astype(MXU_DTYPE),
                        preferred_element_type=jnp.float32)   # (c2, P) f32
            pooled = y
            for i, dk in enumerate(deltas):
                pooled = pool2d(pooled, dk // 2)
                z = z + jnp.dot(w2_ref[i + 1], pooled.astype(MXU_DTYPE),
                                preferred_element_type=jnp.float32)

            z = _silu(z + b2_ref[...])
            o_ref[b] = z.astype(o_ref.dtype)

    return kernel


# ------------------------------ wrapper --------------------------------------

def _fold_conv1x1_bn(p):
    """Fold eval-mode BN into a 1x1 conv: returns ((Cout, Cin) weight, (Cout, 1) bias)."""
    scale = p["gamma"] * lax.rsqrt(p["var"] + BN_EPS)          # (Cout,)
    w = p["w"][:, :, 0, 0] * scale[:, None]                    # (Cout, Cin)
    bias = p["beta"] - p["mean"] * scale                       # (Cout,)
    return w, bias.reshape(-1, 1)


def spp_forward_pallas(params, x_nchw, *, batch_block=1):
    """SPP forward on NCHW input; one fused Pallas kernel, grid over batch blocks."""
    n, c1, h, w = x_nchw.shape
    assert n % batch_block == 0
    P = h * w
    L = len(POOL_KS) + 1

    w1, b1 = _fold_conv1x1_bn(params["cv1"])                   # (c_, c1), (c_, 1)
    w2, b2 = _fold_conv1x1_bn(params["cv2"])                   # (c2, L*c_), (c2, 1)
    c_hidden = w1.shape[0]
    c_out = w2.shape[0]
    assert w2.shape[1] == L * c_hidden

    # NCHW -> (N, C, H*W) is a free reshape; the kernel is channels-major so no
    # NCHW<->NHWC transpose passes exist, and the f32->bf16 operand cast happens
    # inside the kernel (no extra HBM read/write pass).
    x3 = x_nchw.reshape(n, c1, P)
    w1b = w1.astype(MXU_DTYPE)
    w2b = w2.reshape(c_out, L, c_hidden).transpose(1, 0, 2).astype(MXU_DTYPE)
    col = (jnp.arange(P, dtype=jnp.int32) % w).reshape(1, P)   # host-built col index

    kernel = _make_spp_kernel(h, w, POOL_KS)
    out = pl.pallas_call(
        kernel,
        out_shape=jax.ShapeDtypeStruct((n, c_out, P), jnp.float32),
        grid=(n // batch_block,),
        in_specs=[
            pl.BlockSpec((1, P), lambda b: (0, 0)),                      # col idx
            pl.BlockSpec((batch_block, c1, P), lambda b: (b, 0, 0)),     # x
            pl.BlockSpec((c_hidden, c1), lambda b: (0, 0)),              # w1
            pl.BlockSpec((c_hidden, 1), lambda b: (0, 0)),               # b1
            pl.BlockSpec((L, c_out, c_hidden), lambda b: (0, 0, 0)),     # w2
            pl.BlockSpec((c_out, 1), lambda b: (0, 0)),                  # b2
        ],
        out_specs=pl.BlockSpec((batch_block, c_out, P), lambda b: (b, 0, 0)),
        compiler_params=pltpu.CompilerParams(
            dimension_semantics=("parallel",),
            # Explicit scoped-VMEM limit: raises v5e's 16 MiB default, stays
            # well inside v7x's 64 MiB physical VMEM.  Re-size together with
            # the row-block tiling at production resolutions.
            vmem_limit_bytes=32 * 1024 * 1024,
        ),
    )(col, x3, w1b, b1, w2b, b2)
    return out.reshape(n, c_out, h, w)                         # NCHW, free reshape


# ------------------------------ parameters -----------------------------------

def make_conv_params(key, cin, cout):
    kw, kg, kb, km, kv = jax.random.split(key, 5)
    return {
        "w": jax.random.normal(kw, (cout, cin, 1, 1), jnp.float32) / jnp.sqrt(cin),
        "gamma": 1.0 + 0.1 * jax.random.normal(kg, (cout,), jnp.float32),
        "beta": 0.1 * jax.random.normal(kb, (cout,), jnp.float32),
        "mean": 0.1 * jax.random.normal(km, (cout,), jnp.float32),
        "var": jnp.abs(1.0 + 0.1 * jax.random.normal(kv, (cout,), jnp.float32)),
    }


def init_spp_params(key, c1, c2):
    c_hidden = c1 // 2
    k1, k2 = jax.random.split(key)
    return {
        "cv1": make_conv_params(k1, c1, c_hidden),
        "cv2": make_conv_params(k2, c_hidden * (len(POOL_KS) + 1), c2),
    }


# --------------------------- pure-JAX reference -------------------------------

def _conv1x1_bn_silu_ref(x, p):
    y = lax.conv_general_dilated(x, p["w"], (1, 1), ((0, 0), (0, 0)),
                                 dimension_numbers=("NCHW", "OIHW", "NCHW"))
    scale = p["gamma"] / jnp.sqrt(p["var"] + BN_EPS)
    bias = p["beta"] - p["mean"] * scale
    y = y * scale[None, :, None, None] + bias[None, :, None, None]
    return y * jax.nn.sigmoid(y)


def _maxpool_ref(x, k):
    p = k // 2
    return lax.reduce_window(x, -jnp.inf, lax.max,
                             window_dimensions=(1, 1, k, k),
                             window_strides=(1, 1, 1, 1),
                             padding=((0, 0), (0, 0), (p, p), (p, p)))


def spp_forward_ref(params, x):
    y = _conv1x1_bn_silu_ref(x, params["cv1"])
    cat = jnp.concatenate([y] + [_maxpool_ref(y, k) for k in POOL_KS], axis=1)
    return _conv1x1_bn_silu_ref(cat, params["cv2"])


# ---------------------------------- main --------------------------------------

if __name__ == "__main__":
    key = jax.random.PRNGKey(0)
    k_param, k_x = jax.random.split(key)

    c1, c2 = 8, 8                    # SPP(c1=8, c2=8) -> c_ = 4, cv2 in = 16
    N, H, W = 2, 16, 16
    x = jax.random.normal(k_x, (N, c1, H, W), jnp.float32)   # NCHW, like PyTorch

    params = init_spp_params(k_param, c1, c2)

    out = jax.jit(spp_forward_pallas)(params, x)
    out = jax.block_until_ready(out)

    ref = jax.block_until_ready(spp_forward_ref(params, x))

    assert out.shape == (N, c2, H, W), out.shape
    # Tolerance sized for bf16 MXU operands/weights with tiny K (8/16) vs a
    # pure-f32 reference; the tanh-form SiLU removed the approximate-reciprocal
    # error component, so typical error is far below this bound.
    max_err = float(jnp.max(jnp.abs(out - ref)))
    assert jnp.allclose(out, ref, atol=1e-1, rtol=1e-1), max_err

    print("KERNEL_OK")
</pallas_src>

<mosaic_0001>
module attributes {stable_mosaic.version = 11 : i64} {
  func.func @kernel(%arg0: i32, %arg1: memref<1x256xi32, #tpu.memory_space<vmem>>, %arg2: memref<1x8x256xf32, #tpu.memory_space<vmem>>, %arg3: memref<4x8xbf16, #tpu.memory_space<vmem>>, %arg4: memref<4x1xf32, #tpu.memory_space<vmem>>, %arg5: memref<4x8x4xbf16, #tpu.memory_space<vmem>>, %arg6: memref<8x1xf32, #tpu.memory_space<vmem>>, %arg7: memref<1x8x256xf32, #tpu.memory_space<vmem>>) attributes {dimension_semantics = [#tpu.dimension_semantics<parallel>], iteration_bounds = array<i64: 2>, scalar_prefetch = 0 : i64, scratch_operands = 0 : i64, tpu.core_type = #tpu.core_type<tc>, window_params = [{pipeline_mode = #tpu.pipeline_mode<synchronous>, transform_indices = @transform_0, window_bounds = array<i64: 1, 256>}, {transform_indices = @transform_1, window_bounds = array<i64: 1, 8, 256>}, {pipeline_mode = #tpu.pipeline_mode<synchronous>, transform_indices = @transform_2, window_bounds = array<i64: 4, 8>}, {pipeline_mode = #tpu.pipeline_mode<synchronous>, transform_indices = @transform_3, window_bounds = array<i64: 4, 1>}, {pipeline_mode = #tpu.pipeline_mode<synchronous>, transform_indices = @transform_4, window_bounds = array<i64: 4, 8, 4>}, {pipeline_mode = #tpu.pipeline_mode<synchronous>, transform_indices = @transform_5, window_bounds = array<i64: 8, 1>}, {transform_indices = @transform_6, window_bounds = array<i64: 1, 8, 256>}]} {
    %c0 = arith.constant 0 : index
    %c0_0 = arith.constant 0 : index
    %0 = vector.load %arg1[%c0, %c0_0] : memref<1x256xi32, #tpu.memory_space<vmem>>, vector<1x256xi32>
    %1 = tpu.iota {dimensions = array<i32: 1>} : vector<1x256xi32>
    %c15_i32 = arith.constant 15 : i32
    %2 = vector.broadcast %c15_i32 : i32 to vector<1x256xi32>
    %3 = arith.cmpi slt, %0, %2 : vector<1x256xi32>
    %c1_i32 = arith.constant 1 : i32
    %4 = vector.broadcast %c1_i32 : i32 to vector<1x256xi32>
    %5 = arith.cmpi sge, %0, %4 : vector<1x256xi32>
    %c240_i32 = arith.constant 240 : i32
    %6 = vector.broadcast %c240_i32 : i32 to vector<1x256xi32>
    %7 = arith.cmpi slt, %1, %6 : vector<1x256xi32>
    %c16_i32 = arith.constant 16 : i32
    %8 = vector.broadcast %c16_i32 : i32 to vector<1x256xi32>
    %9 = arith.cmpi sge, %1, %8 : vector<1x256xi32>
    %c14_i32 = arith.constant 14 : i32
    %10 = vector.broadcast %c14_i32 : i32 to vector<1x256xi32>
    %11 = arith.cmpi slt, %0, %10 : vector<1x256xi32>
    %c2_i32 = arith.constant 2 : i32
    %12 = vector.broadcast %c2_i32 : i32 to vector<1x256xi32>
    %13 = arith.cmpi sge, %0, %12 : vector<1x256xi32>
    %c224_i32 = arith.constant 224 : i32
    %14 = vector.broadcast %c224_i32 : i32 to vector<1x256xi32>
    %15 = arith.cmpi slt, %1, %14 : vector<1x256xi32>
    %c32_i32 = arith.constant 32 : i32
    %16 = vector.broadcast %c32_i32 : i32 to vector<1x256xi32>
    %17 = arith.cmpi sge, %1, %16 : vector<1x256xi32>
    %c0_1 = arith.constant 0 : index
    %c0_2 = arith.constant 0 : index
    %c0_3 = arith.constant 0 : index
    %18 = vector.load %arg2[%c0_1, %c0_2, %c0_3] : memref<1x8x256xf32, #tpu.memory_space<vmem>>, vector<1x8x256xf32>
    %19 = vector.shape_cast %18 : vector<1x8x256xf32> to vector<8x256xf32>
    %20 = arith.truncf %19 : vector<8x256xf32> to vector<8x256xbf16>
    %c0_4 = arith.constant 0 : index
    %c0_5 = arith.constant 0 : index
    %21 = vector.load %arg3[%c0_4, %c0_5] : memref<4x8xbf16, #tpu.memory_space<vmem>>, vector<4x8xbf16>
    %cst = arith.constant dense<0.000000e+00> : vector<4x256xf32>
    %22 = tpu.matmul %21, %20, %cst {dimension_numbers = #tpu.dot_dimension_numbers<[1], [0], [0], [1], [0, 0, 1, 1], [], []>} : vector<4x8xbf16>, vector<8x256xbf16>, vector<4x256xf32> -> vector<4x256xf32>
    %c0_6 = arith.constant 0 : index
    %c0_7 = arith.constant 0 : index
    %23 = vector.load %arg4[%c0_6, %c0_7] : memref<4x1xf32, #tpu.memory_space<vmem>>, vector<4x1xf32>
    %24 = vector.broadcast %23 : vector<4x1xf32> to vector<4x256xf32>
    %25 = arith.addf %22, %24 : vector<4x256xf32>
    %cst_8 = arith.constant 5.000000e-01 : f32
    %26 = vector.broadcast %cst_8 : f32 to vector<4x256xf32>
    %27 = arith.mulf %26, %25 : vector<4x256xf32>
    %28 = math.tanh %27 : vector<4x256xf32>
    %cst_9 = arith.constant 5.000000e-01 : f32
    %29 = vector.broadcast %cst_9 : f32 to vector<4x256xf32>
    %30 = arith.mulf %29, %28 : vector<4x256xf32>
    %cst_10 = arith.constant 5.000000e-01 : f32
    %31 = vector.broadcast %cst_10 : f32 to vector<4x256xf32>
    %32 = arith.addf %30, %31 : vector<4x256xf32>
    %33 = arith.mulf %25, %32 : vector<4x256xf32>
    %c0_11 = arith.constant 0 : index
    %c0_12 = arith.constant 0 : index
    %c0_13 = arith.constant 0 : index
    %34 = vector.load %arg5[%c0_11, %c0_12, %c0_13] : memref<4x8x4xbf16, #tpu.memory_space<vmem>>, vector<1x8x4xbf16>
    %35 = vector.shape_cast %34 : vector<1x8x4xbf16> to vector<8x4xbf16>
    %36 = arith.truncf %33 : vector<4x256xf32> to vector<4x256xbf16>
    %cst_14 = arith.constant dense<0.000000e+00> : vector<8x256xf32>
    %37 = tpu.matmul %35, %36, %cst_14 {dimension_numbers = #tpu.dot_dimension_numbers<[1], [0], [0], [1], [0, 0, 1, 1], [], []>} : vector<8x4xbf16>, vector<4x256xbf16>, vector<8x256xf32> -> vector<8x256xf32>
    %c255_i32 = arith.constant 255 : i32
    %38 = tpu.dynamic_rotate %33 by %c255_i32 dim 1 : vector<4x256xf32>, i32 -> vector<4x256xf32>
    %cst_15 = arith.constant -1.000000e+30 : f32
    %39 = vector.shape_cast %3 : vector<1x256xi1> to vector<1x256xi1>
    %40 = vector.broadcast %39 : vector<1x256xi1> to vector<4x256xi1>
    %41 = vector.broadcast %cst_15 : f32 to vector<4x256xf32>
    %42 = arith.select %40, %38, %41 : vector<4x256xi1>, vector<4x256xf32>
    %c1_i32_16 = arith.constant 1 : i32
    %43 = tpu.dynamic_rotate %33 by %c1_i32_16 dim 1 : vector<4x256xf32>, i32 -> vector<4x256xf32>
    %cst_17 = arith.constant -1.000000e+30 : f32
    %44 = vector.shape_cast %5 : vector<1x256xi1> to vector<1x256xi1>
    %45 = vector.broadcast %44 : vector<1x256xi1> to vector<4x256xi1>
    %46 = vector.broadcast %cst_17 : f32 to vector<4x256xf32>
    %47 = arith.select %45, %43, %46 : vector<4x256xi1>, vector<4x256xf32>
    %48 = arith.maximumf %42, %47 : vector<4x256xf32>
    %49 = arith.maximumf %33, %48 : vector<4x256xf32>
    %c254_i32 = arith.constant 254 : i32
    %50 = tpu.dynamic_rotate %33 by %c254_i32 dim 1 : vector<4x256xf32>, i32 -> vector<4x256xf32>
    %cst_18 = arith.constant -1.000000e+30 : f32
    %51 = vector.shape_cast %11 : vector<1x256xi1> to vector<1x256xi1>
    %52 = vector.broadcast %51 : vector<1x256xi1> to vector<4x256xi1>
    %53 = vector.broadcast %cst_18 : f32 to vector<4x256xf32>
    %54 = arith.select %52, %50, %53 : vector<4x256xi1>, vector<4x256xf32>
    %c2_i32_19 = arith.constant 2 : i32
    %55 = tpu.dynamic_rotate %33 by %c2_i32_19 dim 1 : vector<4x256xf32>, i32 -> vector<4x256xf32>
    %cst_20 = arith.constant -1.000000e+30 : f32
    %56 = vector.shape_cast %13 : vector<1x256xi1> to vector<1x256xi1>
    %57 = vector.broadcast %56 : vector<1x256xi1> to vector<4x256xi1>
    %58 = vector.broadcast %cst_20 : f32 to vector<4x256xf32>
    %59 = arith.select %57, %55, %58 : vector<4x256xi1>, vector<4x256xf32>
    %60 = arith.maximumf %54, %59 : vector<4x256xf32>
    %61 = arith.maximumf %49, %60 : vector<4x256xf32>
    %c240_i32_21 = arith.constant 240 : i32
    %62 = tpu.dynamic_rotate %61 by %c240_i32_21 dim 1 : vector<4x256xf32>, i32 -> vector<4x256xf32>
    %cst_22 = arith.constant -1.000000e+30 : f32
    %63 = vector.shape_cast %7 : vector<1x256xi1> to vector<1x256xi1>
    %64 = vector.broadcast %63 : vector<1x256xi1> to vector<4x256xi1>
    %65 = vector.broadcast %cst_22 : f32 to vector<4x256xf32>
    %66 = arith.select %64, %62, %65 : vector<4x256xi1>, vector<4x256xf32>
    %c16_i32_23 = arith.constant 16 : i32
    %67 = tpu.dynamic_rotate %61 by %c16_i32_23 dim 1 : vector<4x256xf32>, i32 -> vector<4x256xf32>
    %cst_24 = arith.constant -1.000000e+30 : f32
    %68 = vector.shape_cast %9 : vector<1x256xi1> to vector<1x256xi1>
    %69 = vector.broadcast %68 : vector<1x256xi1> to vector<4x256xi1>
    %70 = vector.broadcast %cst_24 : f32 to vector<4x256xf32>
    %71 = arith.select %69, %67, %70 : vector<4x256xi1>, vector<4x256xf32>
    %72 = arith.maximumf %66, %71 : vector<4x256xf32>
    %73 = arith.maximumf %61, %72 : vector<4x256xf32>
    %c224_i32_25 = arith.constant 224 : i32
    %74 = tpu.dynamic_rotate %61 by %c224_i32_25 dim 1 : vector<4x256xf32>, i32 -> vector<4x256xf32>
    %cst_26 = arith.constant -1.000000e+30 : f32
    %75 = vector.shape_cast %15 : vector<1x256xi1> to vector<1x256xi1>
    %76 = vector.broadcast %75 : vector<1x256xi1> to vector<4x256xi1>
    %77 = vector.broadcast %cst_26 : f32 to vector<4x256xf32>
    %78 = arith.select %76, %74, %77 : vector<4x256xi1>, vector<4x256xf32>
    %c32_i32_27 = arith.constant 32 : i32
    %79 = tpu.dynamic_rotate %61 by %c32_i32_27 dim 1 : vector<4x256xf32>, i32 -> vector<4x256xf32>
    %cst_28 = arith.constant -1.000000e+30 : f32
    %80 = vector.shape_cast %17 : vector<1x256xi1> to vector<1x256xi1>
    %81 = vector.broadcast %80 : vector<1x256xi1> to vector<4x256xi1>
    %82 = vector.broadcast %cst_28 : f32 to vector<4x256xf32>
    %83 = arith.select %81, %79, %82 : vector<4x256xi1>, vector<4x256xf32>
    %84 = arith.maximumf %78, %83 : vector<4x256xf32>
    %85 = arith.maximumf %73, %84 : vector<4x256xf32>
    %c1 = arith.constant 1 : index
    %c0_29 = arith.constant 0 : index
    %c0_30 = arith.constant 0 : index
    %86 = vector.load %arg5[%c1, %c0_29, %c0_30] : memref<4x8x4xbf16, #tpu.memory_space<vmem>>, vector<1x8x4xbf16>
    %87 = vector.shape_cast %86 : vector<1x8x4xbf16> to vector<8x4xbf16>
    %88 = arith.truncf %85 : vector<4x256xf32> to vector<4x256xbf16>
    %cst_31 = arith.constant dense<0.000000e+00> : vector<8x256xf32>
    %89 = tpu.matmul %87, %88, %cst_31 {dimension_numbers = #tpu.dot_dimension_numbers<[1], [0], [0], [1], [0, 0, 1, 1], [], []>} : vector<8x4xbf16>, vector<4x256xbf16>, vector<8x256xf32> -> vector<8x256xf32>
    %90 = arith.addf %37, %89 : vector<8x256xf32>
    %c255_i32_32 = arith.constant 255 : i32
    %91 = tpu.dynamic_rotate %85 by %c255_i32_32 dim 1 : vector<4x256xf32>, i32 -> vector<4x256xf32>
    %cst_33 = arith.constant -1.000000e+30 : f32
    %92 = vector.shape_cast %3 : vector<1x256xi1> to vector<1x256xi1>
    %93 = vector.broadcast %92 : vector<1x256xi1> to vector<4x256xi1>
    %94 = vector.broadcast %cst_33 : f32 to vector<4x256xf32>
    %95 = arith.select %93, %91, %94 : vector<4x256xi1>, vector<4x256xf32>
    %c1_i32_34 = arith.constant 1 : i32
    %96 = tpu.dynamic_rotate %85 by %c1_i32_34 dim 1 : vector<4x256xf32>, i32 -> vector<4x256xf32>
    %cst_35 = arith.constant -1.000000e+30 : f32
    %97 = vector.shape_cast %5 : vector<1x256xi1> to vector<1x256xi1>
    %98 = vector.broadcast %97 : vector<1x256xi1> to vector<4x256xi1>
    %99 = vector.broadcast %cst_35 : f32 to vector<4x256xf32>
    %100 = arith.select %98, %96, %99 : vector<4x256xi1>, vector<4x256xf32>
    %101 = arith.maximumf %95, %100 : vector<4x256xf32>
    %102 = arith.maximumf %85, %101 : vector<4x256xf32>
    %c254_i32_36 = arith.constant 254 : i32
    %103 = tpu.dynamic_rotate %85 by %c254_i32_36 dim 1 : vector<4x256xf32>, i32 -> vector<4x256xf32>
    %cst_37 = arith.constant -1.000000e+30 : f32
    %104 = vector.shape_cast %11 : vector<1x256xi1> to vector<1x256xi1>
    %105 = vector.broadcast %104 : vector<1x256xi1> to vector<4x256xi1>
    %106 = vector.broadcast %cst_37 : f32 to vector<4x256xf32>
    %107 = arith.select %105, %103, %106 : vector<4x256xi1>, vector<4x256xf32>
    %c2_i32_38 = arith.constant 2 : i32
    %108 = tpu.dynamic_rotate %85 by %c2_i32_38 dim 1 : vector<4x256xf32>, i32 -> vector<4x256xf32>
    %cst_39 = arith.constant -1.000000e+30 : f32
    %109 = vector.shape_cast %13 : vector<1x256xi1> to vector<1x256xi1>
    %110 = vector.broadcast %109 : vector<1x256xi1> to vector<4x256xi1>
    %111 = vector.broadcast %cst_39 : f32 to vector<4x256xf32>
    %112 = arith.select %110, %108, %111 : vector<4x256xi1>, vector<4x256xf32>
    %113 = arith.maximumf %107, %112 : vector<4x256xf32>
    %114 = arith.maximumf %102, %113 : vector<4x256xf32>
    %c240_i32_40 = arith.constant 240 : i32
    %115 = tpu.dynamic_rotate %114 by %c240_i32_40 dim 1 : vector<4x256xf32>, i32 -> vector<4x256xf32>
    %cst_41 = arith.constant -1.000000e+30 : f32
    %116 = vector.shape_cast %7 : vector<1x256xi1> to vector<1x256xi1>
    %117 = vector.broadcast %116 : vector<1x256xi1> to vector<4x256xi1>
    %118 = vector.broadcast %cst_41 : f32 to vector<4x256xf32>
    %119 = arith.select %117, %115, %118 : vector<4x256xi1>, vector<4x256xf32>
    %c16_i32_42 = arith.constant 16 : i32
    %120 = tpu.dynamic_rotate %114 by %c16_i32_42 dim 1 : vector<4x256xf32>, i32 -> vector<4x256xf32>
    %cst_43 = arith.constant -1.000000e+30 : f32
    %121 = vector.shape_cast %9 : vector<1x256xi1> to vector<1x256xi1>
    %122 = vector.broadcast %121 : vector<1x256xi1> to vector<4x256xi1>
    %123 = vector.broadcast %cst_43 : f32 to vector<4x256xf32>
    %124 = arith.select %122, %120, %123 : vector<4x256xi1>, vector<4x256xf32>
    %125 = arith.maximumf %119, %124 : vector<4x256xf32>
    %126 = arith.maximumf %114, %125 : vector<4x256xf32>
    %c224_i32_44 = arith.constant 224 : i32
    %127 = tpu.dynamic_rotate %114 by %c224_i32_44 dim 1 : vector<4x256xf32>, i32 -> vector<4x256xf32>
    %cst_45 = arith.constant -1.000000e+30 : f32
    %128 = vector.shape_cast %15 : vector<1x256xi1> to vector<1x256xi1>
    %129 = vector.broadcast %128 : vector<1x256xi1> to vector<4x256xi1>
    %130 = vector.broadcast %cst_45 : f32 to vector<4x256xf32>
    %131 = arith.select %129, %127, %130 : vector<4x256xi1>, vector<4x256xf32>
    %c32_i32_46 = arith.constant 32 : i32
    %132 = tpu.dynamic_rotate %114 by %c32_i32_46 dim 1 : vector<4x256xf32>, i32 -> vector<4x256xf32>
    %cst_47 = arith.constant -1.000000e+30 : f32
    %133 = vector.shape_cast %17 : vector<1x256xi1> to vector<1x256xi1>
    %134 = vector.broadcast %133 : vector<1x256xi1> to vector<4x256xi1>
    %135 = vector.broadcast %cst_47 : f32 to vector<4x256xf32>
    %136 = arith.select %134, %132, %135 : vector<4x256xi1>, vector<4x256xf32>
    %137 = arith.maximumf %131, %136 : vector<4x256xf32>
    %138 = arith.maximumf %126, %137 : vector<4x256xf32>
    %c2 = arith.constant 2 : index
    %c0_48 = arith.constant 0 : index
    %c0_49 = arith.constant 0 : index
    %139 = vector.load %arg5[%c2, %c0_48, %c0_49] : memref<4x8x4xbf16, #tpu.memory_space<vmem>>, vector<1x8x4xbf16>
    %140 = vector.shape_cast %139 : vector<1x8x4xbf16> to vector<8x4xbf16>
    %141 = arith.truncf %138 : vector<4x256xf32> to vector<4x256xbf16>
    %cst_50 = arith.constant dense<0.000000e+00> : vector<8x256xf32>
    %142 = tpu.matmul %140, %141, %cst_50 {dimension_numbers = #tpu.dot_dimension_numbers<[1], [0], [0], [1], [0, 0, 1, 1], [], []>} : vector<8x4xbf16>, vector<4x256xbf16>, vector<8x256xf32> -> vector<8x256xf32>
    %143 = arith.addf %90, %142 : vector<8x256xf32>
    %c255_i32_51 = arith.constant 255 : i32
    %144 = tpu.dynamic_rotate %138 by %c255_i32_51 dim 1 : vector<4x256xf32>, i32 -> vector<4x256xf32>
    %cst_52 = arith.constant -1.000000e+30 : f32
    %145 = vector.shape_cast %3 : vector<1x256xi1> to vector<1x256xi1>
    %146 = vector.broadcast %145 : vector<1x256xi1> to vector<4x256xi1>
    %147 = vector.broadcast %cst_52 : f32 to vector<4x256xf32>
    %148 = arith.select %146, %144, %147 : vector<4x256xi1>, vector<4x256xf32>
    %c1_i32_53 = arith.constant 1 : i32
    %149 = tpu.dynamic_rotate %138 by %c1_i32_53 dim 1 : vector<4x256xf32>, i32 -> vector<4x256xf32>
    %cst_54 = arith.constant -1.000000e+30 : f32
    %150 = vector.shape_cast %5 : vector<1x256xi1> to vector<1x256xi1>
    %151 = vector.broadcast %150 : vector<1x256xi1> to vector<4x256xi1>
    %152 = vector.broadcast %cst_54 : f32 to vector<4x256xf32>
    %153 = arith.select %151, %149, %152 : vector<4x256xi1>, vector<4x256xf32>
    %154 = arith.maximumf %148, %153 : vector<4x256xf32>
    %155 = arith.maximumf %138, %154 : vector<4x256xf32>
    %c254_i32_55 = arith.constant 254 : i32
    %156 = tpu.dynamic_rotate %138 by %c254_i32_55 dim 1 : vector<4x256xf32>, i32 -> vector<4x256xf32>
    %cst_56 = arith.constant -1.000000e+30 : f32
    %157 = vector.shape_cast %11 : vector<1x256xi1> to vector<1x256xi1>
    %158 = vector.broadcast %157 : vector<1x256xi1> to vector<4x256xi1>
    %159 = vector.broadcast %cst_56 : f32 to vector<4x256xf32>
    %160 = arith.select %158, %156, %159 : vector<4x256xi1>, vector<4x256xf32>
    %c2_i32_57 = arith.constant 2 : i32
    %161 = tpu.dynamic_rotate %138 by %c2_i32_57 dim 1 : vector<4x256xf32>, i32 -> vector<4x256xf32>
    %cst_58 = arith.constant -1.000000e+30 : f32
    %162 = vector.shape_cast %13 : vector<1x256xi1> to vector<1x256xi1>
    %163 = vector.broadcast %162 : vector<1x256xi1> to vector<4x256xi1>
    %164 = vector.broadcast %cst_58 : f32 to vector<4x256xf32>
    %165 = arith.select %163, %161, %164 : vector<4x256xi1>, vector<4x256xf32>
    %166 = arith.maximumf %160, %165 : vector<4x256xf32>
    %167 = arith.maximumf %155, %166 : vector<4x256xf32>
    %c240_i32_59 = arith.constant 240 : i32
    %168 = tpu.dynamic_rotate %167 by %c240_i32_59 dim 1 : vector<4x256xf32>, i32 -> vector<4x256xf32>
    %cst_60 = arith.constant -1.000000e+30 : f32
    %169 = vector.shape_cast %7 : vector<1x256xi1> to vector<1x256xi1>
    %170 = vector.broadcast %169 : vector<1x256xi1> to vector<4x256xi1>
    %171 = vector.broadcast %cst_60 : f32 to vector<4x256xf32>
    %172 = arith.select %170, %168, %171 : vector<4x256xi1>, vector<4x256xf32>
    %c16_i32_61 = arith.constant 16 : i32
    %173 = tpu.dynamic_rotate %167 by %c16_i32_61 dim 1 : vector<4x256xf32>, i32 -> vector<4x256xf32>
    %cst_62 = arith.constant -1.000000e+30 : f32
    %174 = vector.shape_cast %9 : vector<1x256xi1> to vector<1x256xi1>
    %175 = vector.broadcast %174 : vector<1x256xi1> to vector<4x256xi1>
    %176 = vector.broadcast %cst_62 : f32 to vector<4x256xf32>
    %177 = arith.select %175, %173, %176 : vector<4x256xi1>, vector<4x256xf32>
    %178 = arith.maximumf %172, %177 : vector<4x256xf32>
    %179 = arith.maximumf %167, %178 : vector<4x256xf32>
    %c224_i32_63 = arith.constant 224 : i32
    %180 = tpu.dynamic_rotate %167 by %c224_i32_63 dim 1 : vector<4x256xf32>, i32 -> vector<4x256xf32>
    %cst_64 = arith.constant -1.000000e+30 : f32
    %181 = vector.shape_cast %15 : vector<1x256xi1> to vector<1x256xi1>
    %182 = vector.broadcast %181 : vector<1x256xi1> to vector<4x256xi1>
    %183 = vector.broadcast %cst_64 : f32 to vector<4x256xf32>
    %184 = arith.select %182, %180, %183 : vector<4x256xi1>, vector<4x256xf32>
    %c32_i32_65 = arith.constant 32 : i32
    %185 = tpu.dynamic_rotate %167 by %c32_i32_65 dim 1 : vector<4x256xf32>, i32 -> vector<4x256xf32>
    %cst_66 = arith.constant -1.000000e+30 : f32
    %186 = vector.shape_cast %17 : vector<1x256xi1> to vector<1x256xi1>
    %187 = vector.broadcast %186 : vector<1x256xi1> to vector<4x256xi1>
    %188 = vector.broadcast %cst_66 : f32 to vector<4x256xf32>
    %189 = arith.select %187, %185, %188 : vector<4x256xi1>, vector<4x256xf32>
    %190 = arith.maximumf %184, %189 : vector<4x256xf32>
    %191 = arith.maximumf %179, %190 : vector<4x256xf32>
    %c3 = arith.constant 3 : index
    %c0_67 = arith.constant 0 : index
    %c0_68 = arith.constant 0 : index
    %192 = vector.load %arg5[%c3, %c0_67, %c0_68] : memref<4x8x4xbf16, #tpu.memory_space<vmem>>, vector<1x8x4xbf16>
    %193 = vector.shape_cast %192 : vector<1x8x4xbf16> to vector<8x4xbf16>
    %194 = arith.truncf %191 : vector<4x256xf32> to vector<4x256xbf16>
    %cst_69 = arith.constant dense<0.000000e+00> : vector<8x256xf32>
    %195 = tpu.matmul %193, %194, %cst_69 {dimension_numbers = #tpu.dot_dimension_numbers<[1], [0], [0], [1], [0, 0, 1, 1], [], []>} : vector<8x4xbf16>, vector<4x256xbf16>, vector<8x256xf32> -> vector<8x256xf32>
    %196 = arith.addf %143, %195 : vector<8x256xf32>
    %c0_70 = arith.constant 0 : index
    %c0_71 = arith.constant 0 : index
    %197 = vector.load %arg6[%c0_70, %c0_71] : memref<8x1xf32, #tpu.memory_space<vmem>>, vector<8x1xf32>
    %198 = vector.broadcast %197 : vector<8x1xf32> to vector<8x256xf32>
    %199 = arith.addf %196, %198 : vector<8x256xf32>
    %cst_72 = arith.constant 5.000000e-01 : f32
    %200 = vector.broadcast %cst_72 : f32 to vector<8x256xf32>
    %201 = arith.mulf %200, %199 : vector<8x256xf32>
    %202 = math.tanh %201 : vector<8x256xf32>
    %cst_73 = arith.constant 5.000000e-01 : f32
    %203 = vector.broadcast %cst_73 : f32 to vector<8x256xf32>
    %204 = arith.mulf %203, %202 : vector<8x256xf32>
    %cst_74 = arith.constant 5.000000e-01 : f32
    %205 = vector.broadcast %cst_74 : f32 to vector<8x256xf32>
    %206 = arith.addf %204, %205 : vector<8x256xf32>
    %207 = arith.mulf %199, %206 : vector<8x256xf32>
    %c0_75 = arith.constant 0 : index
    %c0_76 = arith.constant 0 : index
    %c0_77 = arith.constant 0 : index
    %208 = vector.load %arg7[%c0_75, %c0_76, %c0_77] : memref<1x8x256xf32, #tpu.memory_space<vmem>>, vector<1x8x256xf32>
    %209 = vector.shape_cast %208 : vector<1x8x256xf32> to vector<8x256xf32>
    %210 = vector.shape_cast %207 : vector<8x256xf32> to vector<1x8x256xf32>
    tpu.vector_store %arg7[%c0_75, %c0_76, %c0_77], %210 {strides = array<i32>} : memref<1x8x256xf32, #tpu.memory_space<vmem>>, vector<1x8x256xf32>,
    return
  }
  func.func @transform_0(%arg0: i32) -> (i32, i32) {
    %c0_i32 = arith.constant 0 : i32
    %c0_i32_0 = arith.constant 0 : i32
    %c0_i32_1 = arith.constant 0 : i32
    return %c0_i32, %c0_i32_0 : i32, i32
  }
  func.func @transform_1(%arg0: i32) -> (i32, i32, i32) {
    %c0_i32 = arith.constant 0 : i32
    %c0_i32_0 = arith.constant 0 : i32
    %c0_i32_1 = arith.constant 0 : i32
    return %arg0, %c0_i32, %c0_i32_0 : i32, i32, i32
  }
  func.func @transform_2(%arg0: i32) -> (i32, i32) {
    %c0_i32 = arith.constant 0 : i32
    %c0_i32_0 = arith.constant 0 : i32
    %c0_i32_1 = arith.constant 0 : i32
    return %c0_i32, %c0_i32_0 : i32, i32
  }
  func.func @transform_3(%arg0: i32) -> (i32, i32) {
    %c0_i32 = arith.constant 0 : i32
    %c0_i32_0 = arith.constant 0 : i32
    %c0_i32_1 = arith.constant 0 : i32
    return %c0_i32, %c0_i32_0 : i32, i32
  }
  func.func @transform_4(%arg0: i32) -> (i32, i32, i32) {
    %c0_i32 = arith.constant 0 : i32
    %c0_i32_0 = arith.constant 0 : i32
    %c0_i32_1 = arith.constant 0 : i32
    %c0_i32_2 = arith.constant 0 : i32
    return %c0_i32, %c0_i32_0, %c0_i32_1 : i32, i32, i32
  }
  func.func @transform_5(%arg0: i32) -> (i32, i32) {
    %c0_i32 = arith.constant 0 : i32
    %c0_i32_0 = arith.constant 0 : i32
    %c0_i32_1 = arith.constant 0 : i32
    return %c0_i32, %c0_i32_0 : i32, i32
  }
  func.func @transform_6(%arg0: i32) -> (i32, i32, i32) {
    %c0_i32 = arith.constant 0 : i32
    %c0_i32_0 = arith.constant 0 : i32
    %c0_i32_1 = arith.constant 0 : i32
    return %arg0, %c0_i32, %c0_i32_0 : i32, i32, i32
  }
}

</mosaic_0001>

<llo_original>
// kernel: spp_forward_pallas.1
$region0: #{spp_forward_pallas.1}
  #allocation0 [shape = 'u32[]', space=smem, size = 0x4, offset = 0x4, fixed_abs, tag = 'smem constant byte address 0x4 - core index']
  #allocation1 [shape = 'u32[144,128]{1,0:T(1,128)}', space=vmem, size = 0x12000, scoped, tag = 'internal scratch']
  %s0 = inlined_call_operand.vmem [shape: s32[1,256], index: 0, kind: input, shape index: {}]
  %s1 = inlined_call_operand.vmem [shape: f32[2,8,256], index: 1, kind: input, shape index: {}]
  %s2 = inlined_call_operand.vmem [shape: bf16[4,8], index: 2, kind: input, shape index: {}]
  %s3 = inlined_call_operand.vmem [shape: f32[4,1], index: 3, kind: input, shape index: {}]
  %s4 = inlined_call_operand.vmem [shape: bf16[4,8,4], index: 4, kind: input, shape index: {}]
  %s5 = inlined_call_operand.vmem [shape: f32[8,1], index: 5, kind: input, shape index: {}]
  %s6 = inlined_call_operand.vmem [shape: f32[2,8,256], index: 6, kind: output, shape index: {}]
  %s7 = sld [smem:[#allocation0]]
  $region57: #{spp_forward_pallas.1} parent=0
    _
  %s9 = ssub.s32 1, %s7
  %s10 = scalar_select 0, %s9, %s7
  loop: start=0, step=1, limit=4
  $region2: #{spp_forward_pallas.1} parent=0 // loop_pre_header
    _
  $region3: #{spp_forward_pallas.1} parent=0 // loop_header
    %s12 = sphi 0, %s16
    %p13 = scmp.ge.s32.totalorder %s12, 4
    %s20 = sphi 0, %s20
    %s22 = sphi 0, %s20
    %s23 = sphi 0, %s22
    %s37 = sphi 0, %s23
    %s43 = sphi 0, %s45
    %s46 = sphi 0, %s43
    %s47 = sphi 0, %s46
    %s63 = sphi 0, %s47
    %s67 = sphi 0, %s67
    %s69 = sphi 0, %s67
    %s70 = sphi 0, %s69
    %s84 = sphi 0, %s70
    %s88 = sphi 0, %s88
    %s90 = sphi 0, %s88
    %s91 = sphi 0, %s90
    %s105 = sphi 0, %s91
    %s109 = sphi 0, %s109
    %s111 = sphi 0, %s109
    %s112 = sphi 0, %s111
    %s126 = sphi 0, %s112
    %s130 = sphi 0, %s130
    %s132 = sphi 0, %s130
    %s133 = sphi 0, %s132
    %s147 = sphi 0, %s133
    %s153 = sphi 0, %s155
    %s156 = sphi 0, %s153
    %s157 = sphi 0, %s156
    %s173 = sphi 0, %s157
  $region4: #{spp_forward_pallas.1} parent=0 // loop_header_branch
    %15 = sbr.rel (%p13) target = $region8
  $region5: #{spp_forward_pallas.1} parent=0 // loop_body
    %s17 = ssub.s32 %s12, 1
    %s18 = ssub.s32 %s12, 2
    %s19 = sadd.s32 %s12, 1
    %s21 = sadd.s32 %s20, 1
    %p24 = scmp.eq.s32.totalorder %s12, 1
    %p25 = scmp.ne.s32.totalorder %s20, %s22
    %p26 = scmp.eq.s32.totalorder %s12, 0
    %p27 = por %p25, %p26
    %p28 = scmp.ne.s32.totalorder %s20, %s22
    %p29 = scmp.eq.s32.totalorder %s17, 1
    %p30 = por %p28, %p29
    %p31 = scmp.ne.s32.totalorder %s22, %s23
    %p32 = scmp.eq.s32.totalorder %s17, 0
    %p33 = por %p31, %p32
    %p34 = scmp.ne.s32.totalorder %s22, %s23
    %p35 = scmp.eq.s32.totalorder %s18, 1
    %p36 = por %p34, %p35
    %p38 = scmp.ne.s32.totalorder %s23, %s37
    %p39 = scmp.eq.s32.totalorder %s18, 0
    %p40 = por %p38, %p39
    %s41 = ssub.s32 %s12, %s19
    %p42 = scmp.eq.s32.totalorder %s41, 0
    %s44 = sadd.s32 %s43, 1
    %s45 = scalar_select %p42, %s43, %s44
    %p48 = pneg %p42
    %p49 = scmp.eq.s32.totalorder %s12, 1
    %p50 = por %p48, %p49
    %p51 = scmp.ne.s32.totalorder %s43, %s46
    %p52 = scmp.eq.s32.totalorder %s12, 0
    %p53 = por %p51, %p52
    %p54 = scmp.ne.s32.totalorder %s43, %s46
    %p55 = scmp.eq.s32.totalorder %s17, 1
    %p56 = por %p54, %p55
    %p57 = scmp.ne.s32.totalorder %s46, %s47
    %p58 = scmp.eq.s32.totalorder %s17, 0
    %p59 = por %p57, %p58
    %p60 = scmp.ne.s32.totalorder %s46, %s47
    %p61 = scmp.eq.s32.totalorder %s18, 1
    %p62 = por %p60, %p61
    %p64 = scmp.ne.s32.totalorder %s47, %s63
    %p65 = scmp.eq.s32.totalorder %s18, 0
    %p66 = por %p64, %p65
    %s68 = sadd.s32 %s67, 1
    %p71 = scmp.eq.s32.totalorder %s12, 1
    %p72 = scmp.ne.s32.totalorder %s67, %s69
    %p73 = scmp.eq.s32.totalorder %s12, 0
    %p74 = por %p72, %p73
    %p75 = scmp.ne.s32.totalorder %s67, %s69
    %p76 = scmp.eq.s32.totalorder %s17, 1
    %p77 = por %p75, %p76
    %p78 = scmp.ne.s32.totalorder %s69, %s70
    %p79 = scmp.eq.s32.totalorder %s17, 0
    %p80 = por %p78, %p79
    %p81 = scmp.ne.s32.totalorder %s69, %s70
    %p82 = scmp.eq.s32.totalorder %s18, 1
    %p83 = por %p81, %p82
    %p85 = scmp.ne.s32.totalorder %s70, %s84
    %p86 = scmp.eq.s32.totalorder %s18, 0
    %p87 = por %p85, %p86
    %s89 = sadd.s32 %s88, 1
    %p92 = scmp.eq.s32.totalorder %s12, 1
    %p93 = scmp.ne.s32.totalorder %s88, %s90
    %p94 = scmp.eq.s32.totalorder %s12, 0
    %p95 = por %p93, %p94
    %p96 = scmp.ne.s32.totalorder %s88, %s90
    %p97 = scmp.eq.s32.totalorder %s17, 1
    %p98 = por %p96, %p97
    %p99 = scmp.ne.s32.totalorder %s90, %s91
    %p100 = scmp.eq.s32.totalorder %s17, 0
    %p101 = por %p99, %p100
    %p102 = scmp.ne.s32.totalorder %s90, %s91
    %p103 = scmp.eq.s32.totalorder %s18, 1
    %p104 = por %p102, %p103
    %p106 = scmp.ne.s32.totalorder %s91, %s105
    %p107 = scmp.eq.s32.totalorder %s18, 0
    %p108 = por %p106, %p107
    %s110 = sadd.s32 %s109, 1
    %p113 = scmp.eq.s32.totalorder %s12, 1
    %p114 = scmp.ne.s32.totalorder %s109, %s111
    %p115 = scmp.eq.s32.totalorder %s12, 0
    %p116 = por %p114, %p115
    %p117 = scmp.ne.s32.totalorder %s109, %s111
    %p118 = scmp.eq.s32.totalorder %s17, 1
    %p119 = por %p117, %p118
    %p120 = scmp.ne.s32.totalorder %s111, %s112
    %p121 = scmp.eq.s32.totalorder %s17, 0
    %p122 = por %p120, %p121
    %p123 = scmp.ne.s32.totalorder %s111, %s112
    %p124 = scmp.eq.s32.totalorder %s18, 1
    %p125 = por %p123, %p124
    %p127 = scmp.ne.s32.totalorder %s112, %s126
    %p128 = scmp.eq.s32.totalorder %s18, 0
    %p129 = por %p127, %p128
    %s131 = sadd.s32 %s130, 1
    %p134 = scmp.eq.s32.totalorder %s12, 1
    %p135 = scmp.ne.s32.totalorder %s130, %s132
    %p136 = scmp.eq.s32.totalorder %s12, 0
    %p137 = por %p135, %p136
    %p138 = scmp.ne.s32.totalorder %s130, %s132
    %p139 = scmp.eq.s32.totalorder %s17, 1
    %p140 = por %p138, %p139
    %p141 = scmp.ne.s32.totalorder %s132, %s133
    %p142 = scmp.eq.s32.totalorder %s17, 0
    %p143 = por %p141, %p142
    %p144 = scmp.ne.s32.totalorder %s132, %s133
    %p145 = scmp.eq.s32.totalorder %s18, 1
    %p146 = por %p144, %p145
    %p148 = scmp.ne.s32.totalorder %s133, %s147
    %p149 = scmp.eq.s32.totalorder %s18, 0
    %p150 = por %p148, %p149
    %s151 = ssub.s32 %s12, %s19
    %p152 = scmp.eq.s32.totalorder %s151, 0
    %s154 = sadd.s32 %s153, 1
    %s155 = scalar_select %p152, %s153, %s154
    %p158 = pneg %p152
    %p159 = scmp.eq.s32.totalorder %s12, 1
    %p160 = por %p158, %p159
    %p161 = scmp.ne.s32.totalorder %s153, %s156
    %p162 = scmp.eq.s32.totalorder %s12, 0
    %p163 = por %p161, %p162
    %p164 = scmp.ne.s32.totalorder %s153, %s156
    %p165 = scmp.eq.s32.totalorder %s17, 1
    %p166 = por %p164, %p165
    %p167 = scmp.ne.s32.totalorder %s156, %s157
    %p168 = scmp.eq.s32.totalorder %s17, 0
    %p169 = por %p167, %p168
    %p170 = scmp.ne.s32.totalorder %s156, %s157
    %p171 = scmp.eq.s32.totalorder %s18, 1
    %p172 = por %p170, %p171
    %p174 = scmp.ne.s32.totalorder %s157, %s173
    %p175 = scmp.eq.s32.totalorder %s18, 0
    %p176 = por %p174, %p175
    %p177 = scmp.le.s32.totalorder 1, %s12
    %p178 = scmp.lt.s32.totalorder %s12, 3
    %p179 = pnand %p177, %p178
    %p180 = pneg %p179
    // Predicated region
    $region9: #{spp_forward_pallas.1} parent=5 // pred_check
      _
    $region10: #{spp_forward_pallas.1} parent=5 // pred_check_branch
      %182 = sbr.rel (%p179) target = $region12
    $region11: #{spp_forward_pallas.1} parent=5 // pred_region
      %s183 = ssub.s32 %s12, 1
      // Predicated region
      $region13: #{spp_forward_pallas.1} parent=11 // pred_check
        %p184 = pneg %p33
      $region14: #{spp_forward_pallas.1} parent=11 // pred_check_branch
        %186 = sbr.rel (%p184) target = $region16
      $region15: #{spp_forward_pallas.1} parent=11 // pred_region
        _
      $region16: #{spp_forward_pallas.1} parent=11 // pred_fallthru
        _
      // Predicated region
      $region17: #{spp_forward_pallas.1} parent=11 // pred_check
        %p187 = pneg %p80
      $region18: #{spp_forward_pallas.1} parent=11 // pred_check_branch
        %189 = sbr.rel (%p187) target = $region20
      $region19: #{spp_forward_pallas.1} parent=11 // pred_region
        _
      $region20: #{spp_forward_pallas.1} parent=11 // pred_fallthru
        _
      // Predicated region
      $region21: #{spp_forward_pallas.1} parent=11 // pred_check
        %p190 = pneg %p101
      $region22: #{spp_forward_pallas.1} parent=11 // pred_check_branch
        %192 = sbr.rel (%p190) target = $region24
      $region23: #{spp_forward_pallas.1} parent=11 // pred_region
        _
      $region24: #{spp_forward_pallas.1} parent=11 // pred_fallthru
        _
      // Predicated region
      $region25: #{spp_forward_pallas.1} parent=11 // pred_check
        %p193 = pneg %p122
      $region26: #{spp_forward_pallas.1} parent=11 // pred_check_branch
        %195 = sbr.rel (%p193) target = $region28
      $region27: #{spp_forward_pallas.1} parent=11 // pred_region
        _
      $region28: #{spp_forward_pallas.1} parent=11 // pred_fallthru
        _
      // Predicated region
      $region29: #{spp_forward_pallas.1} parent=11 // pred_check
        %p196 = pneg %p143
      $region30: #{spp_forward_pallas.1} parent=11 // pred_check_branch
        %198 = sbr.rel (%p196) target = $region32
      $region31: #{spp_forward_pallas.1} parent=11 // pred_region
        _
      $region32: #{spp_forward_pallas.1} parent=11 // pred_fallthru
        _
    $region12: #{spp_forward_pallas.1} parent=5 // pred_fallthru
      _
    %p199 = scmp.lt.s32.totalorder %s12, 2
    // Predicated region
    $region33: #{spp_forward_pallas.1} parent=5 // pred_check
      %p200 = pneg %p199
    $region34: #{spp_forward_pallas.1} parent=5 // pred_check_branch
      %202 = sbr.rel (%p200) target = $region36
    $region35: #{spp_forward_pallas.1} parent=5 // pred_region
      // Predicated region
      $region37: #{spp_forward_pallas.1} parent=35 // pred_check
        %p203 = pneg %p53
      $region38: #{spp_forward_pallas.1} parent=35 // pred_check_branch
        %205 = sbr.rel (%p203) target = $region40
      $region39: #{spp_forward_pallas.1} parent=35 // pred_region
        %p206 = scmp.lt.s32.totalorder %s12, 1
        %s207 = scalar_select %p206, %s12, 1
        %s208 = smul.addr %s207, 2
        %s209 = smul.addr %s208, 8
        %s210 = scalar_lea.vmem %s1, %s209
      $region40: #{spp_forward_pallas.1} parent=35 // pred_fallthru
        _
    $region36: #{spp_forward_pallas.1} parent=5 // pred_fallthru
      _
    %p211 = scmp.le.s32.totalorder 1, %s12
    %p212 = scmp.lt.s32.totalorder %s12, 3
    %p213 = pnand %p211, %p212
    %p214 = pneg %p213
    // Predicated region
    $region41: #{spp_forward_pallas.1} parent=5 // pred_check
      _
    $region42: #{spp_forward_pallas.1} parent=5 // pred_check_branch
      %216 = sbr.rel (%p213) target = $region44
    $region43: #{spp_forward_pallas.1} parent=5 // pred_region
      %s217 = ssub.s32 %s12, 1
      %p218 = pneg %p33
      %p219 = pneg %p30
      %p220 = scmp.lt.s32.totalorder %s17, 1
      %s221 = scalar_select %p220, %s17, 1
      %s222 = smul.addr %s221, 2
      %s223 = smul.addr %s222, 8
      %s224 = scalar_lea.vmem %s1, %s223
      %p225 = pneg %p59
      %p226 = pneg %p56
      %p227 = pneg %p80
      %p228 = pneg %p77
      %p229 = pneg %p101
      %p230 = pneg %p98
      %p231 = pneg %p122
      %p232 = pneg %p119
      %p233 = pneg %p143
      %p234 = pneg %p140
      %p235 = pneg %p169
      %p236 = pneg %p166
      %p237 = scmp.lt.s32.totalorder %s17, 1
      %s238 = scalar_select %p237, %s17, 1
      %s239 = smul.addr %s238, 2
      %s240 = smul.addr %s239, 8
      %s241 = scalar_lea.vmem %s6, %s240
      %p242 = scmp.lt.s32.totalorder %s17, 1
      %s243 = scalar_select %p242, %s17, 1
      %s244 = smul.addr %s243, 2
      %s245 = smul.addr %s244, 8
      %s246 = scalar_lea.vmem %s1, %s245
      %p247 = scmp.lt.s32.totalorder %s17, 1
      %s248 = scalar_select %p247, %s17, 1
      %s249 = smul.addr %s248, 2
      %s250 = smul.addr %s249, 8
      %s251 = scalar_lea.vmem %s6, %s250
      %v253 = vld [vmem:[%s0] sm:$0x3]
      %v254 = vlaneseq
      %v255 = vand.u32 %v254, 127
      %v256 = vadd.s32 %v255, 128
      %vm257 = vcmp.lt.s32.totalorder %v253, 15
      %vm258 = vcmp.ge.s32.totalorder %v253, 1
      %vm259 = vcmp.lt.s32.totalorder %v255, 240
      %vm260 = vcmp.lt.s32.totalorder %v256, 240
      %vm261 = vcmp.ge.s32.totalorder %v255, 16
      %vm262 = vcmp.ge.s32.totalorder %v256, 16
      %vm263 = vcmp.lt.s32.totalorder %v253, 14
      %vm264 = vcmp.ge.s32.totalorder %v253, 2
      %vm265 = vcmp.lt.s32.totalorder %v255, 224
      %vm266 = vcmp.lt.s32.totalorder %v256, 224
      %vm267 = vcmp.ge.s32.totalorder %v255, 32
      %vm268 = vcmp.ge.s32.totalorder %v256, 32
      %v269 = vld [vmem:[%s246] sm:$0xff]
      %v270 = vld [vmem:[%s246 + $0x8] sm:$0xff]
      %v271 = vpack.c.bf16 %v269, %v269
      %v272 = vpack.c.bf16 %v270, %v270
      %v273 = vld [vmem:[%s2] sm:$0x3]
      %v274 = vld [vmem:[%s3] sm:$0xf]
      %276 = vset.pattern.permute.xlu0 0
      %277 = vperm.xlu0 %276, %v274
      %v278 = vpop.permute.xlu0 %277
      %vm280 = vcmask 64512
      %v282 = vsel %vm280, %v273, 0
      %vm284 = vcmask 1043456
      %v286 = vsel %vm284, %v271, 0
      %v289 = vsel %vm284, %v272, 0
      %291 = vmatprep.subr.bf16.mxu0 %v289
      %292 = vmatpush1.bf16.msra.mxu0 %v286
      %293 = vmatprep.subr.bf16.mxu0 0
      %294 = vmatpush1.bf16.msra.mxu0 0
      %295 = vmatprep.subr.bf16.mxu0 0
      %296 = vmatpush1.bf16.msra.mxu0 0
      %297 = vmatprep.subr.bf16.mxu0 0
      %298 = vmatpush1.bf16.msra.mxu0 0
      %299 = vmatprep.subr.bf16.mxu0 0
      %300 = vmatpush1.bf16.msra.mxu0 0
      %301 = vmatprep.subr.bf16.mxu0 0
      %302 = vmatpush1.bf16.msra.mxu0 0
      %303 = vmatprep.subr.bf16.mxu0 0
      %304 = vmatpush1.bf16.msra.mxu0 0
      %305 = vmatprep.subr.bf16.mxu0 0
      %306 = vmatpush1.bf16.msra.mxu0 0
      %307 = vmatprep.subr.bf16.mxu0 0
      %308 = vmatpush1.bf16.msra.mxu0 0
      %309 = vmatprep.subr.bf16.mxu0 0
      %310 = vmatpush1.bf16.msra.mxu0 0
      %311 = vmatprep.subr.bf16.mxu0 0
      %312 = vmatpush1.bf16.msra.mxu0 0
      %313 = vmatprep.subr.bf16.mxu0 0
      %314 = vmatpush1.bf16.msra.mxu0 0
      %315 = vmatprep.subr.bf16.mxu0 0
      %316 = vmatpush1.bf16.msra.mxu0 0
      %317 = vmatprep.subr.bf16.mxu0 0
      %318 = vmatpush1.bf16.msra.mxu0 0
      %319 = vmatprep.subr.bf16.mxu0 0
      %320 = vmatpush1.bf16.msra.mxu0 0
      %321 = vmatprep.subr.bf16.mxu0 0
      %322 = vmatpush1.bf16.msra.mxu0 0
      %323 = vmatprep.mubr.bf16.mxu0 0
      %324 = vmatmul.mubr.bf16.gmra.mrb[0].mxu0 %v282
      %v325 = vpop.f32.mrb[0].mxu0
      %v326 = vadd.f32 %v278, %v325
      %v327 = vpop.f32.mrb[0].mxu0
      %v328 = vadd.f32 %v278, %v327
      %v329 = vpop.f32.mrb[0].mxu0
      %v330 = vpop.f32.mrb[0].mxu0
      %331 = vdwg.mxu0
      %v332 = vmul.f32 %v326, 0.5
      %v333 = vmul.f32 %v328, 0.5
      %v334 = vtanh.pop %v332
      %v335 = vtanh.pop %v333
      %v336 = vmul.f32 %v334, 0.5
      %v337 = vmul.f32 %v335, 0.5
      %v338 = vadd.f32 %v336, 0.5
      %v339 = vadd.f32 %v337, 0.5
      %v340 = vmul.f32 %v326, %v338
      %v341 = vmul.f32 %v328, %v339
      %v342 = vld [vmem:[%s4] sm:$0xf]
      %v343 = vpack.c.bf16 %v340, %v340
      %v344 = vpack.c.bf16 %v341, %v341
      %345 = vrot.lane.b32.xlu0 %v340, 127
      %v346 = vpop.permute.xlu0 %345
      %347 = vrot.lane.b32.xlu0 %v341, 127
      %v348 = vpop.permute.xlu0 %347
      %vm349 = vcmp.lt.s32.totalorder %v255, 127
      %v350 = vsel %vm349, %v346, %v348
      %v351 = vsel %vm349, %v348, %v346
      %v352 = vsel %vm257, 1, 0
      %v353 = vlaneseq
      %v354 = vshrl.u32 %v353, 7
      %v355 = vsub.s32 0, %v354
      %v356 = vrot.slane %v352, %v355
      %v357 = vlaneseq
      %v358 = vshrl.u32 %v357, 7
      %v359 = vsub.s32 1, %v358
      %v360 = vrot.slane %v352, %v359
      %vm361 = vcmp.eq.s32.totalorder %v356, 1
      %vm362 = vcmp.eq.s32.totalorder %v360, 1
      %v363 = vsel %vm361, %v350, -1e+30
      %v364 = vsel %vm362, %v351, -1e+30
      %365 = vrot.lane.b32.xlu0 %v340, 1
      %v366 = vpop.permute.xlu0 %365
      %367 = vrot.lane.b32.xlu0 %v341, 1
      %v368 = vpop.permute.xlu0 %367
      %vm369 = vcmp.lt.s32.totalorder %v255, 1
      %v370 = vsel %vm369, %v366, %v368
      %v371 = vsel %vm369, %v368, %v366
      %v372 = vsel %vm258, 1, 0
      %v373 = vlaneseq
      %v374 = vshrl.u32 %v373, 7
      %v375 = vsub.s32 0, %v374
      %v376 = vrot.slane %v372, %v375
      %v377 = vlaneseq
      %v378 = vshrl.u32 %v377, 7
      %v379 = vsub.s32 1, %v378
      %v380 = vrot.slane %v372, %v379
      %vm381 = vcmp.eq.s32.totalorder %v376, 1
      %vm382 = vcmp.eq.s32.totalorder %v380, 1
      %v383 = vsel %vm381, %v371, -1e+30
      %v384 = vsel %vm382, %v370, -1e+30
      %v385 = vmax.f32 %v363, %v383
      %v386 = vmax.f32 %v364, %v384
      %v387 = vmax.f32 %v340, %v385
      %v388 = vmax.f32 %v341, %v386
      %389 = vrot.lane.b32.xlu0 %v340, 126
      %v390 = vpop.permute.xlu0 %389
      %391 = vrot.lane.b32.xlu0 %v341, 126
      %v392 = vpop.permute.xlu0 %391
      %vm393 = vcmp.lt.s32.totalorder %v255, 126
      %v394 = vsel %vm393, %v390, %v392
      %v395 = vsel %vm393, %v392, %v390
      %v396 = vsel %vm263, 1, 0
      %v397 = vlaneseq
      %v398 = vshrl.u32 %v397, 7
      %v399 = vsub.s32 0, %v398
      %v400 = vrot.slane %v396, %v399
      %v401 = vlaneseq
      %v402 = vshrl.u32 %v401, 7
      %v403 = vsub.s32 1, %v402
      %v404 = vrot.slane %v396, %v403
      %vm405 = vcmp.eq.s32.totalorder %v400, 1
      %vm406 = vcmp.eq.s32.totalorder %v404, 1
      %v407 = vsel %vm405, %v394, -1e+30
      %v408 = vsel %vm406, %v395, -1e+30
      %409 = vrot.lane.b32.xlu0 %v340, 2
      %v410 = vpop.permute.xlu0 %409
      %411 = vrot.lane.b32.xlu0 %v341, 2
      %v412 = vpop.permute.xlu0 %411
      %vm413 = vcmp.lt.s32.totalorder %v255, 2
      %v414 = vsel %vm413, %v410, %v412
      %v415 = vsel %vm413, %v412, %v410
      %v416 = vsel %vm264, 1, 0
      %v417 = vlaneseq
      %v418 = vshrl.u32 %v417, 7
      %v419 = vsub.s32 0, %v418
      %v420 = vrot.slane %v416, %v419
      %v421 = vlaneseq
      %v422 = vshrl.u32 %v421, 7
      %v423 = vsub.s32 1, %v422
      %v424 = vrot.slane %v416, %v423
      %vm425 = vcmp.eq.s32.totalorder %v420, 1
      %vm426 = vcmp.eq.s32.totalorder %v424, 1
      %v427 = vsel %vm425, %v415, -1e+30
      %v428 = vsel %vm426, %v414, -1e+30
      %v429 = vmax.f32 %v407, %v427
      %v430 = vmax.f32 %v408, %v428
      %v431 = vmax.f32 %v387, %v429
      %v432 = vmax.f32 %v388, %v430
      %433 = vrot.lane.b32.xlu0 %v431, 112
      %v434 = vpop.permute.xlu0 %433
      %435 = vrot.lane.b32.xlu0 %v432, 112
      %v436 = vpop.permute.xlu0 %435
      %vm437 = vcmp.lt.s32.totalorder %v255, 112
      %v438 = vsel %vm437, %v434, %v436
      %v439 = vsel %vm437, %v436, %v434
      %v440 = vsel %vm259, 1, 0
      %v441 = vsel %vm260, 1, 0
      %vm442 = vcmp.eq.s32.totalorder %v440, 1
      %vm443 = vcmp.eq.s32.totalorder %v441, 1
      %v444 = vsel %vm442, %v438, -1e+30
      %v445 = vsel %vm443, %v439, -1e+30
      %446 = vrot.lane.b32.xlu0 %v431, 16
      %v447 = vpop.permute.xlu0 %446
      %448 = vrot.lane.b32.xlu0 %v432, 16
      %v449 = vpop.permute.xlu0 %448
      %vm450 = vcmp.lt.s32.totalorder %v255, 16
      %v451 = vsel %vm450, %v447, %v449
      %v452 = vsel %vm450, %v449, %v447
      %v453 = vsel %vm261, 1, 0
      %v454 = vsel %vm262, 1, 0
      %vm455 = vcmp.eq.s32.totalorder %v453, 1
      %vm456 = vcmp.eq.s32.totalorder %v454, 1
      %v457 = vsel %vm455, %v452, -1e+30
      %v458 = vsel %vm456, %v451, -1e+30
      %v459 = vmax.f32 %v444, %v457
      %v460 = vmax.f32 %v445, %v458
      %v461 = vmax.f32 %v431, %v459
      %v462 = vmax.f32 %v432, %v460
      %463 = vrot.lane.b32.xlu0 %v431, 96
      %v464 = vpop.permute.xlu0 %463
      %465 = vrot.lane.b32.xlu0 %v432, 96
      %v466 = vpop.permute.xlu0 %465
      %vm467 = vcmp.lt.s32.totalorder %v255, 96
      %v468 = vsel %vm467, %v464, %v466
      %v469 = vsel %vm467, %v466, %v464
      %v470 = vsel %vm265, 1, 0
      %v471 = vsel %vm266, 1, 0
      %vm472 = vcmp.eq.s32.totalorder %v470, 1
      %vm473 = vcmp.eq.s32.totalorder %v471, 1
      %v474 = vsel %vm472, %v468, -1e+30
      %v475 = vsel %vm473, %v469, -1e+30
      %476 = vrot.lane.b32.xlu0 %v431, 32
      %v477 = vpop.permute.xlu0 %476
      %478 = vrot.lane.b32.xlu0 %v432, 32
      %v479 = vpop.permute.xlu0 %478
      %vm480 = vcmp.lt.s32.totalorder %v255, 32
      %v481 = vsel %vm480, %v477, %v479
      %v482 = vsel %vm480, %v479, %v477
      %v483 = vsel %vm267, 1, 0
      %v484 = vsel %vm268, 1, 0
      %vm485 = vcmp.eq.s32.totalorder %v483, 1
      %vm486 = vcmp.eq.s32.totalorder %v484, 1
      %v487 = vsel %vm485, %v482, -1e+30
      %v488 = vsel %vm486, %v481, -1e+30
      %v489 = vmax.f32 %v474, %v487
      %v490 = vmax.f32 %v475, %v488
      %v491 = vmax.f32 %v461, %v489
      %v492 = vmax.f32 %v462, %v490
      %s493 = scalar_lea.vmem %s4, 4
      %v494 = vld [vmem:[%s493] sm:$0xf]
      %v495 = vpack.c.bf16 %v491, %v491
      %v496 = vpack.c.bf16 %v492, %v492
      %vm497 = vcmask 31744
      %v499 = vsel %vm497, %v494, 0
      %vm501 = vcmask 1041408
      %v503 = vsel %vm501, %v495, 0
      %v506 = vsel %vm501, %v496, 0
      %508 = vmatprep.subr.bf16.mxu0 %v506
      %509 = vmatpush1.bf16.msra.mxu0 %v503
      %510 = vmatprep.subr.bf16.mxu0 0
      %511 = vmatpush1.bf16.msra.mxu0 0
      %512 = vmatprep.subr.bf16.mxu0 0
      %513 = vmatpush1.bf16.msra.mxu0 0
      %514 = vmatprep.subr.bf16.mxu0 0
      %515 = vmatpush1.bf16.msra.mxu0 0
      %516 = vmatprep.subr.bf16.mxu0 0
      %517 = vmatpush1.bf16.msra.mxu0 0
      %518 = vmatprep.subr.bf16.mxu0 0
      %519 = vmatpush1.bf16.msra.mxu0 0
      %520 = vmatprep.subr.bf16.mxu0 0
      %521 = vmatpush1.bf16.msra.mxu0 0
      %522 = vmatprep.subr.bf16.mxu0 0
      %523 = vmatpush1.bf16.msra.mxu0 0
      %524 = vmatprep.subr.bf16.mxu0 0
      %525 = vmatpush1.bf16.msra.mxu0 0
      %526 = vmatprep.subr.bf16.mxu0 0
      %527 = vmatpush1.bf16.msra.mxu0 0
      %528 = vmatprep.subr.bf16.mxu0 0
      %529 = vmatpush1.bf16.msra.mxu0 0
      %530 = vmatprep.subr.bf16.mxu0 0
      %531 = vmatpush1.bf16.msra.mxu0 0
      %532 = vmatprep.subr.bf16.mxu0 0
      %533 = vmatpush1.bf16.msra.mxu0 0
      %534 = vmatprep.subr.bf16.mxu0 0
      %535 = vmatpush1.bf16.msra.mxu0 0
      %536 = vmatprep.subr.bf16.mxu0 0
      %537 = vmatpush1.bf16.msra.mxu0 0
      %538 = vmatprep.subr.bf16.mxu0 0
      %539 = vmatpush1.bf16.msra.mxu0 0
      %540 = vmatprep.mubr.bf16.mxu0 0
      %541 = vmatmul.mubr.bf16.gmra.mrb[0].mxu0 %v499
      %v542 = vpop.f32.mrb[0].mxu0
      %v543 = vadd.f32 0.0, %v542
      %v544 = vpop.f32.mrb[0].mxu0
      %v545 = vadd.f32 0.0, %v544
      %v546 = vpop.f32.mrb[0].mxu0
      %v547 = vpop.f32.mrb[0].mxu0
      %548 = vdwg.mxu0
      %v550 = vsel %vm497, %v342, 0
      %v553 = vsel %vm501, %v343, 0
      %v556 = vsel %vm501, %v344, 0
      %558 = vmatprep.subr.bf16.mxu0 %v556
      %559 = vmatpush1.bf16.msra.mxu0 %v553
      %560 = vmatprep.subr.bf16.mxu0 0
      %561 = vmatpush1.bf16.msra.mxu0 0
      %562 = vmatprep.subr.bf16.mxu0 0
      %563 = vmatpush1.bf16.msra.mxu0 0
      %564 = vmatprep.subr.bf16.mxu0 0
      %565 = vmatpush1.bf16.msra.mxu0 0
      %566 = vmatprep.subr.bf16.mxu0 0
      %567 = vmatpush1.bf16.msra.mxu0 0
      %568 = vmatprep.subr.bf16.mxu0 0
      %569 = vmatpush1.bf16.msra.mxu0 0
      %570 = vmatprep.subr.bf16.mxu0 0
      %571 = vmatpush1.bf16.msra.mxu0 0
      %572 = vmatprep.subr.bf16.mxu0 0
      %573 = vmatpush1.bf16.msra.mxu0 0
      %574 = vmatprep.subr.bf16.mxu0 0
      %575 = vmatpush1.bf16.msra.mxu0 0
      %576 = vmatprep.subr.bf16.mxu0 0
      %577 = vmatpush1.bf16.msra.mxu0 0
      %578 = vmatprep.subr.bf16.mxu0 0
      %579 = vmatpush1.bf16.msra.mxu0 0
      %580 = vmatprep.subr.bf16.mxu0 0
      %581 = vmatpush1.bf16.msra.mxu0 0
      %582 = vmatprep.subr.bf16.mxu0 0
      %583 = vmatpush1.bf16.msra.mxu0 0
      %584 = vmatprep.subr.bf16.mxu0 0
      %585 = vmatpush1.bf16.msra.mxu0 0
      %586 = vmatprep.subr.bf16.mxu0 0
      %587 = vmatpush1.bf16.msra.mxu0 0
      %588 = vmatprep.subr.bf16.mxu0 0
      %589 = vmatpush1.bf16.msra.mxu0 0
      %590 = vmatprep.mubr.bf16.mxu0 0
      %591 = vmatmul.mubr.bf16.gmra.mrb[0].mxu0 %v550
      %v592 = vpop.f32.mrb[0].mxu0
      %v593 = vadd.f32 %v543, %v592
      %v594 = vpop.f32.mrb[0].mxu0
      %v595 = vadd.f32 %v545, %v594
      %v596 = vpop.f32.mrb[0].mxu0
      %v597 = vpop.f32.mrb[0].mxu0
      %598 = vdwg.mxu0
      %599 = vrot.lane.b32.xlu0 %v491, 127
      %v600 = vpop.permute.xlu0 %599
      %601 = vrot.lane.b32.xlu0 %v492, 127
      %v602 = vpop.permute.xlu0 %601
      %v603 = vsel %vm349, %v600, %v602
      %v604 = vsel %vm349, %v602, %v600
      %v605 = vsel %vm361, %v603, -1e+30
      %v606 = vsel %vm362, %v604, -1e+30
      %607 = vrot.lane.b32.xlu0 %v491, 1
      %v608 = vpop.permute.xlu0 %607
      %609 = vrot.lane.b32.xlu0 %v492, 1
      %v610 = vpop.permute.xlu0 %609
      %v611 = vsel %vm369, %v608, %v610
      %v612 = vsel %vm369, %v610, %v608
      %v613 = vsel %vm381, %v612, -1e+30
      %v614 = vsel %vm382, %v611, -1e+30
      %v615 = vmax.f32 %v605, %v613
      %v616 = vmax.f32 %v606, %v614
      %v617 = vmax.f32 %v491, %v615
      %v618 = vmax.f32 %v492, %v616
      %619 = vrot.lane.b32.xlu0 %v491, 126
      %v620 = vpop.permute.xlu0 %619
      %621 = vrot.lane.b32.xlu0 %v492, 126
      %v622 = vpop.permute.xlu0 %621
      %v623 = vsel %vm393, %v620, %v622
      %v624 = vsel %vm393, %v622, %v620
      %v625 = vsel %vm405, %v623, -1e+30
      %v626 = vsel %vm406, %v624, -1e+30
      %627 = vrot.lane.b32.xlu0 %v491, 2
      %v628 = vpop.permute.xlu0 %627
      %629 = vrot.lane.b32.xlu0 %v492, 2
      %v630 = vpop.permute.xlu0 %629
      %v631 = vsel %vm413, %v628, %v630
      %v632 = vsel %vm413, %v630, %v628
      %v633 = vsel %vm425, %v632, -1e+30
      %v634 = vsel %vm426, %v631, -1e+30
      %v635 = vmax.f32 %v625, %v633
      %v636 = vmax.f32 %v626, %v634
      %v637 = vmax.f32 %v617, %v635
      %v638 = vmax.f32 %v618, %v636
      %639 = vrot.lane.b32.xlu0 %v637, 112
      %v640 = vpop.permute.xlu0 %639
      %641 = vrot.lane.b32.xlu0 %v638, 112
      %v642 = vpop.permute.xlu0 %641
      %v643 = vsel %vm437, %v640, %v642
      %v644 = vsel %vm437, %v642, %v640
      %v645 = vsel %vm442, %v643, -1e+30
      %v646 = vsel %vm443, %v644, -1e+30
      %647 = vrot.lane.b32.xlu0 %v637, 16
      %v648 = vpop.permute.xlu0 %647
      %649 = vrot.lane.b32.xlu0 %v638, 16
      %v650 = vpop.permute.xlu0 %649
      %v651 = vsel %vm450, %v648, %v650
      %v652 = vsel %vm450, %v650, %v648
      %v653 = vsel %vm455, %v652, -1e+30
      %v654 = vsel %vm456, %v651, -1e+30
      %v655 = vmax.f32 %v645, %v653
      %v656 = vmax.f32 %v646, %v654
      %v657 = vmax.f32 %v637, %v655
      %v658 = vmax.f32 %v638, %v656
      %659 = vrot.lane.b32.xlu0 %v637, 96
      %v660 = vpop.permute.xlu0 %659
      %661 = vrot.lane.b32.xlu0 %v638, 96
      %v662 = vpop.permute.xlu0 %661
      %v663 = vsel %vm467, %v660, %v662
      %v664 = vsel %vm467, %v662, %v660
      %v665 = vsel %vm472, %v663, -1e+30
      %v666 = vsel %vm473, %v664, -1e+30
      %667 = vrot.lane.b32.xlu0 %v637, 32
      %v668 = vpop.permute.xlu0 %667
      %669 = vrot.lane.b32.xlu0 %v638, 32
      %v670 = vpop.permute.xlu0 %669
      %v671 = vsel %vm480, %v668, %v670
      %v672 = vsel %vm480, %v670, %v668
      %v673 = vsel %vm485, %v672, -1e+30
      %v674 = vsel %vm486, %v671, -1e+30
      %v675 = vmax.f32 %v665, %v673
      %v676 = vmax.f32 %v666, %v674
      %v677 = vmax.f32 %v657, %v675
      %v678 = vmax.f32 %v658, %v676
      %s679 = scalar_lea.vmem %s4, 8
      %v680 = vld [vmem:[%s679] sm:$0xf]
      %v681 = vpack.c.bf16 %v677, %v677
      %v682 = vpack.c.bf16 %v678, %v678
      %v684 = vsel %vm497, %v680, 0
      %v687 = vsel %vm501, %v681, 0
      %v690 = vsel %vm501, %v682, 0
      %692 = vmatprep.subr.bf16.mxu0 %v690
      %693 = vmatpush1.bf16.msra.mxu0 %v687
      %694 = vmatprep.subr.bf16.mxu0 0
      %695 = vmatpush1.bf16.msra.mxu0 0
      %696 = vmatprep.subr.bf16.mxu0 0
      %697 = vmatpush1.bf16.msra.mxu0 0
      %698 = vmatprep.subr.bf16.mxu0 0
      %699 = vmatpush1.bf16.msra.mxu0 0
      %700 = vmatprep.subr.bf16.mxu0 0
      %701 = vmatpush1.bf16.msra.mxu0 0
      %702 = vmatprep.subr.bf16.mxu0 0
      %703 = vmatpush1.bf16.msra.mxu0 0
      %704 = vmatprep.subr.bf16.mxu0 0
      %705 = vmatpush1.bf16.msra.mxu0 0
      %706 = vmatprep.subr.bf16.mxu0 0
      %707 = vmatpush1.bf16.msra.mxu0 0
      %708 = vmatprep.subr.bf16.mxu0 0
      %709 = vmatpush1.bf16.msra.mxu0 0
      %710 = vmatprep.subr.bf16.mxu0 0
      %711 = vmatpush1.bf16.msra.mxu0 0
      %712 = vmatprep.subr.bf16.mxu0 0
      %713 = vmatpush1.bf16.msra.mxu0 0
      %714 = vmatprep.subr.bf16.mxu0 0
      %715 = vmatpush1.bf16.msra.mxu0 0
      %716 = vmatprep.subr.bf16.mxu0 0
      %717 = vmatpush1.bf16.msra.mxu0 0
      %718 = vmatprep.subr.bf16.mxu0 0
      %719 = vmatpush1.bf16.msra.mxu0 0
      %720 = vmatprep.subr.bf16.mxu0 0
      %721 = vmatpush1.bf16.msra.mxu0 0
      %722 = vmatprep.subr.bf16.mxu0 0
      %723 = vmatpush1.bf16.msra.mxu0 0
      %724 = vmatprep.mubr.bf16.mxu0 0
      %725 = vmatmul.mubr.bf16.gmra.mrb[0].mxu0 %v684
      %v726 = vpop.f32.mrb[0].mxu0
      %v727 = vadd.f32 0.0, %v726
      %v728 = vpop.f32.mrb[0].mxu0
      %v729 = vadd.f32 0.0, %v728
      %v730 = vpop.f32.mrb[0].mxu0
      %v731 = vpop.f32.mrb[0].mxu0
      %732 = vdwg.mxu0
      %v733 = vadd.f32 %v593, %v727
      %v734 = vadd.f32 %v595, %v729
      %735 = vrot.lane.b32.xlu0 %v677, 127
      %v736 = vpop.permute.xlu0 %735
      %737 = vrot.lane.b32.xlu0 %v678, 127
      %v738 = vpop.permute.xlu0 %737
      %v739 = vsel %vm349, %v736, %v738
      %v740 = vsel %vm349, %v738, %v736
      %v741 = vsel %vm361, %v739, -1e+30
      %v742 = vsel %vm362, %v740, -1e+30
      %743 = vrot.lane.b32.xlu0 %v677, 1
      %v744 = vpop.permute.xlu0 %743
      %745 = vrot.lane.b32.xlu0 %v678, 1
      %v746 = vpop.permute.xlu0 %745
      %v747 = vsel %vm369, %v744, %v746
      %v748 = vsel %vm369, %v746, %v744
      %v749 = vsel %vm381, %v748, -1e+30
      %v750 = vsel %vm382, %v747, -1e+30
      %v751 = vmax.f32 %v741, %v749
      %v752 = vmax.f32 %v742, %v750
      %v753 = vmax.f32 %v677, %v751
      %v754 = vmax.f32 %v678, %v752
      %755 = vrot.lane.b32.xlu0 %v677, 126
      %v756 = vpop.permute.xlu0 %755
      %757 = vrot.lane.b32.xlu0 %v678, 126
      %v758 = vpop.permute.xlu0 %757
      %v759 = vsel %vm393, %v756, %v758
      %v760 = vsel %vm393, %v758, %v756
      %v761 = vsel %vm405, %v759, -1e+30
      %v762 = vsel %vm406, %v760, -1e+30
      %763 = vrot.lane.b32.xlu0 %v677, 2
      %v764 = vpop.permute.xlu0 %763
      %765 = vrot.lane.b32.xlu0 %v678, 2
      %v766 = vpop.permute.xlu0 %765
      %v767 = vsel %vm413, %v764, %v766
      %v768 = vsel %vm413, %v766, %v764
      %v769 = vsel %vm425, %v768, -1e+30
      %v770 = vsel %vm426, %v767, -1e+30
      %v771 = vmax.f32 %v761, %v769
      %v772 = vmax.f32 %v762, %v770
      %v773 = vmax.f32 %v753, %v771
      %v774 = vmax.f32 %v754, %v772
      %775 = vrot.lane.b32.xlu0 %v773, 112
      %v776 = vpop.permute.xlu0 %775
      %777 = vrot.lane.b32.xlu0 %v774, 112
      %v778 = vpop.permute.xlu0 %777
      %v779 = vsel %vm437, %v776, %v778
      %v780 = vsel %vm437, %v778, %v776
      %v781 = vsel %vm442, %v779, -1e+30
      %v782 = vsel %vm443, %v780, -1e+30
      %783 = vrot.lane.b32.xlu0 %v773, 16
      %v784 = vpop.permute.xlu0 %783
      %785 = vrot.lane.b32.xlu0 %v774, 16
      %v786 = vpop.permute.xlu0 %785
      %v787 = vsel %vm450, %v784, %v786
      %v788 = vsel %vm450, %v786, %v784
      %v789 = vsel %vm455, %v788, -1e+30
      %v790 = vsel %vm456, %v787, -1e+30
      %v791 = vmax.f32 %v781, %v789
      %v792 = vmax.f32 %v782, %v790
      %v793 = vmax.f32 %v773, %v791
      %v794 = vmax.f32 %v774, %v792
      %795 = vrot.lane.b32.xlu0 %v773, 96
      %v796 = vpop.permute.xlu0 %795
      %797 = vrot.lane.b32.xlu0 %v774, 96
      %v798 = vpop.permute.xlu0 %797
      %v799 = vsel %vm467, %v796, %v798
      %v800 = vsel %vm467, %v798, %v796
      %v801 = vsel %vm472, %v799, -1e+30
      %v802 = vsel %vm473, %v800, -1e+30
      %803 = vrot.lane.b32.xlu0 %v773, 32
      %v804 = vpop.permute.xlu0 %803
      %805 = vrot.lane.b32.xlu0 %v774, 32
      %v806 = vpop.permute.xlu0 %805
      %v807 = vsel %vm480, %v804, %v806
      %v808 = vsel %vm480, %v806, %v804
      %v809 = vsel %vm485, %v808, -1e+30
      %v810 = vsel %vm486, %v807, -1e+30
      %v811 = vmax.f32 %v801, %v809
      %v812 = vmax.f32 %v802, %v810
      %v813 = vmax.f32 %v793, %v811
      %v814 = vmax.f32 %v794, %v812
      %s815 = scalar_lea.vmem %s4, 12
      %v816 = vld [vmem:[%s815] sm:$0xf]
      %v817 = vpack.c.bf16 %v813, %v813
      %v818 = vpack.c.bf16 %v814, %v814
      %v820 = vsel %vm497, %v816, 0
      %v823 = vsel %vm501, %v817, 0
      %v826 = vsel %vm501, %v818, 0
      %828 = vmatprep.subr.bf16.mxu0 %v826
      %829 = vmatpush1.bf16.msra.mxu0 %v823
      %830 = vmatprep.subr.bf16.mxu0 0
      %831 = vmatpush1.bf16.msra.mxu0 0
      %832 = vmatprep.subr.bf16.mxu0 0
      %833 = vmatpush1.bf16.msra.mxu0 0
      %834 = vmatprep.subr.bf16.mxu0 0
      %835 = vmatpush1.bf16.msra.mxu0 0
      %836 = vmatprep.subr.bf16.mxu0 0
      %837 = vmatpush1.bf16.msra.mxu0 0
      %838 = vmatprep.subr.bf16.mxu0 0
      %839 = vmatpush1.bf16.msra.mxu0 0
      %840 = vmatprep.subr.bf16.mxu0 0
      %841 = vmatpush1.bf16.msra.mxu0 0
      %842 = vmatprep.subr.bf16.mxu0 0
      %843 = vmatpush1.bf16.msra.mxu0 0
      %844 = vmatprep.subr.bf16.mxu0 0
      %845 = vmatpush1.bf16.msra.mxu0 0
      %846 = vmatprep.subr.bf16.mxu0 0
      %847 = vmatpush1.bf16.msra.mxu0 0
      %848 = vmatprep.subr.bf16.mxu0 0
      %849 = vmatpush1.bf16.msra.mxu0 0
      %850 = vmatprep.subr.bf16.mxu0 0
      %851 = vmatpush1.bf16.msra.mxu0 0
      %852 = vmatprep.subr.bf16.mxu0 0
      %853 = vmatpush1.bf16.msra.mxu0 0
      %854 = vmatprep.subr.bf16.mxu0 0
      %855 = vmatpush1.bf16.msra.mxu0 0
      %856 = vmatprep.subr.bf16.mxu0 0
      %857 = vmatpush1.bf16.msra.mxu0 0
      %858 = vmatprep.subr.bf16.mxu0 0
      %859 = vmatpush1.bf16.msra.mxu0 0
      %860 = vmatprep.mubr.bf16.mxu0 0
      %861 = vmatmul.mubr.bf16.gmra.mrb[0].mxu0 %v820
      %v862 = vpop.f32.mrb[0].mxu0
      %v863 = vadd.f32 0.0, %v862
      %v864 = vpop.f32.mrb[0].mxu0
      %v865 = vadd.f32 0.0, %v864
      %v866 = vpop.f32.mrb[0].mxu0
      %v867 = vpop.f32.mrb[0].mxu0
      %868 = vdwg.mxu0
      %v869 = vadd.f32 %v733, %v863
      %v870 = vadd.f32 %v734, %v865
      %v871 = vld [vmem:[%s5] sm:$0xff]
      %873 = vset.pattern.permute.xlu0 0
      %874 = vperm.xlu0 %873, %v871
      %v875 = vpop.permute.xlu0 %874
      %v877 = vadd.f32 %v869, %v875
      %v878 = vadd.f32 %v870, %v875
      %v879 = vmul.f32 %v877, 0.5
      %v880 = vmul.f32 %v878, 0.5
      %v881 = vtanh.pop %v879
      %v882 = vtanh.pop %v880
      %v883 = vmul.f32 %v881, 0.5
      %v884 = vmul.f32 %v882, 0.5
      %v885 = vadd.f32 %v883, 0.5
      %v886 = vadd.f32 %v884, 0.5
      %v887 = vmul.f32 %v877, %v885
      %v888 = vmul.f32 %v878, %v886
      %889 = vst [vmem:[%s251] sm:$0xff] %v887
      %890 = vst [vmem:[%s251 + $0x8] sm:$0xff] %v888
      %p891 = scmp.lt.s32.totalorder %s17, 1
      %s892 = scalar_select %p891, %s17, 1
      %s893 = smul.addr %s892, 2
      %s894 = smul.addr %s893, 8
      %s895 = scalar_lea.vmem %s6, %s894
      // Predicated region
      $region45: #{spp_forward_pallas.1} parent=43 // pred_check
        %p896 = pneg %p166
      $region46: #{spp_forward_pallas.1} parent=43 // pred_check_branch
        %898 = sbr.rel (%p896) target = $region48
      $region47: #{spp_forward_pallas.1} parent=43 // pred_region
        _
      $region48: #{spp_forward_pallas.1} parent=43 // pred_fallthru
        _
    $region44: #{spp_forward_pallas.1} parent=5 // pred_fallthru
      _
    %p899 = scmp.le.s32.totalorder 2, %s12
    // Predicated region
    $region49: #{spp_forward_pallas.1} parent=5 // pred_check
      %p900 = pneg %p899
    $region50: #{spp_forward_pallas.1} parent=5 // pred_check_branch
      %902 = sbr.rel (%p900) target = $region52
    $region51: #{spp_forward_pallas.1} parent=5 // pred_region
      %s903 = ssub.s32 %s12, 2
      // Predicated region
      $region53: #{spp_forward_pallas.1} parent=51 // pred_check
        %p904 = pneg %p172
      $region54: #{spp_forward_pallas.1} parent=51 // pred_check_branch
        %906 = sbr.rel (%p904) target = $region56
      $region55: #{spp_forward_pallas.1} parent=51 // pred_region
        %p907 = scmp.lt.s32.totalorder %s18, 1
        %s908 = scalar_select %p907, %s18, 1
        %s909 = smul.addr %s908, 2
        %s910 = smul.addr %s909, 8
        %s911 = scalar_lea.vmem %s6, %s910
      $region56: #{spp_forward_pallas.1} parent=51 // pred_fallthru
        _
    $region52: #{spp_forward_pallas.1} parent=5 // pred_fallthru
      _
  $region6: #{spp_forward_pallas.1} parent=0 // loop_footer
    %s16 = sadd.s32 1, %s12
  $region7: #{spp_forward_pallas.1} parent=0 // loop_footer_branch
    %11 = sbr.rel target = $region3
  $region8: #{spp_forward_pallas.1} parent=0 // loop_exit
    _

</llo_original>
